<compile_context>
chip_gen: v7x
topology: tpu7x:2x2x1
jax: 0.10.0
libtpu: 0.0.40
codegen_flags: <defaults>
</compile_context>

<pallas_src>
import functools

import jax
import jax.numpy as jnp
from jax.experimental import pallas as pl
from jax.experimental.pallas import tpu as pltpu

_VMEM_LIMIT = 64 * 1024 * 1024  # raise above the 16/32 MiB scoped defaults


def _pick_tile(n, cap):
    """Largest tile <= cap that divides n (cap must be a multiple of 8)."""
    if n <= cap:
        return n
    for t in range(cap, 7, -8):
        if n % t == 0:
            return t
    return n


def qkv_proj_kernel(x_ref, wqkv_ref, bqkv_ref, o_ref):
    # x: (TM, D) f32, wqkv_t: (D, 3D) bf16, bqkv: (1, 3D) f32 -> qkv: (TM, 3D) bf16
    qkv = jnp.dot(x_ref[...].astype(jnp.bfloat16), wqkv_ref[...],
                  preferred_element_type=jnp.float32) + bqkv_ref[...]
    o_ref[...] = qkv.astype(o_ref.dtype)


def attn_ffn_kernel(q_ref, k_ref, v_ref, mask_ref, x_ref,
                    wout_ref, bout_ref, g1_ref, be1_ref,
                    w1_ref, b1_ref, w2_ref, b2_ref, g2_ref, be2_ref,
                    o_ref, *, scale, eps):
    q = q_ref[0]                      # (H, TQ, hd) bf16
    k = k_ref[0]                      # (H, S,  hd) bf16
    v = v_ref[0]                      # (H, S,  hd) bf16

    # Head-stacked attention scores, f32 accumulation on the MXU.
    scores = jnp.einsum('hqd,hkd->hqk', q, k,
                        preferred_element_type=jnp.float32) * scale      # (H, TQ, S)
    # Key-padding mask: added once to the stacked score tensor (hoisted broadcast).
    scores = scores + mask_ref[0][None]                                   # (1, 1, S) bcast

    # Softmax in f32; EUP approx reciprocal instead of a VPU divide.
    m = jnp.max(scores, axis=-1, keepdims=True)
    p = jnp.exp(scores - m)
    denom = jnp.sum(p, axis=-1, keepdims=True)
    p = p * pl.reciprocal(denom, approx=True)

    ctx = jnp.einsum('hqk,hkd->hqd', p.astype(jnp.bfloat16), v,
                     preferred_element_type=jnp.float32)                  # (H, TQ, hd)

    # Output projection accumulated per head: sum_h ctx_h @ Wout_h  (avoids lane-concat).
    attn = jnp.einsum('hqd,hde->hqe', ctx.astype(jnp.bfloat16), wout_ref[...],
                      preferred_element_type=jnp.float32)                 # (H, TQ, D)
    attn = jnp.sum(attn, axis=0) + bout_ref[...]                          # (TQ, D)

    # Residual + LayerNorm1 (dropout1 is identity in eval mode); stats in f32.
    src = x_ref[0] + attn
    mu = jnp.mean(src, axis=-1, keepdims=True)
    var = jnp.mean((src - mu) ** 2, axis=-1, keepdims=True)
    src = (src - mu) * jax.lax.rsqrt(var + eps) * g1_ref[...] + be1_ref[...]

    # FFN: linear2(relu(linear1(src))) — bf16 matmul inputs, f32 accumulation.
    h1 = jnp.dot(src.astype(jnp.bfloat16), w1_ref[...],
                 preferred_element_type=jnp.float32) + b1_ref[...]
    h1 = jnp.maximum(h1, 0.0)
    ffn = jnp.dot(h1.astype(jnp.bfloat16), w2_ref[...],
                  preferred_element_type=jnp.float32) + b2_ref[...]

    # Residual + LayerNorm2 (dropout2 is identity in eval mode).
    src = src + ffn
    mu = jnp.mean(src, axis=-1, keepdims=True)
    var = jnp.mean((src - mu) ** 2, axis=-1, keepdims=True)
    out = (src - mu) * jax.lax.rsqrt(var + eps) * g2_ref[...] + be2_ref[...]

    o_ref[0] = out.astype(o_ref.dtype)


def flash_transformer_encoder_layer(src, key_padding_mask, params, *, nhead, eps=1e-5):
    """src: (B, S, D) float32. key_padding_mask: (B, S) bool, True = padded token."""
    B, S, D = src.shape
    hd = D // nhead
    FF = params['w1'].shape[0]
    scale = 1.0 / (hd ** 0.5)

    # Additive key-padding mask (PyTorch wrapper inverts it for FlashMHA; baked in here):
    # 0.0 for valid keys, -1e30 for padded keys.
    mask_add = jnp.where(key_padding_mask, -1e30, 0.0).astype(jnp.float32).reshape(B, 1, S)

    # Host-side layout plumbing: pre-transpose weights and cast to bf16.
    wqkv_t = params['wqkv'].T.astype(jnp.bfloat16)                       # (D, 3D)
    wout_h = params['wout'].T.reshape(nhead, hd, D).astype(jnp.bfloat16)  # per-head (H, hd, D)
    w1_t = params['w1'].T.astype(jnp.bfloat16)                           # (D, FF)
    w2_t = params['w2'].T.astype(jnp.bfloat16)                           # (FF, D)

    # ---------------- Kernel 1: fused QKV projection over row blocks ----------------
    BS = B * S
    TM = _pick_tile(BS, 256)
    x2d = src.reshape(BS, D)
    qkv = pl.pallas_call(
        qkv_proj_kernel,
        out_shape=jax.ShapeDtypeStruct((BS, 3 * D), jnp.bfloat16),
        grid=(BS // TM,),
        in_specs=[
            pl.BlockSpec((TM, D), lambda i: (i, 0)),
            pl.BlockSpec((D, 3 * D), lambda i: (0, 0)),
            pl.BlockSpec((1, 3 * D), lambda i: (0, 0)),
        ],
        out_specs=pl.BlockSpec((TM, 3 * D), lambda i: (i, 0)),
        compiler_params=pltpu.CompilerParams(
            dimension_semantics=("parallel",),
            vmem_limit_bytes=_VMEM_LIMIT),
    )(x2d, wqkv_t, params['bqkv'])

    # Split heads on the host (free layout plumbing outside the kernel).
    qkv = qkv.reshape(B, S, 3, nhead, hd)
    q = qkv[:, :, 0].transpose(0, 2, 1, 3)   # (B, H, S, hd) bf16
    k = qkv[:, :, 1].transpose(0, 2, 1, 3)
    v = qkv[:, :, 2].transpose(0, 2, 1, 3)

    # ---------------- Kernel 2: attention + out-proj + LN1 + FFN + LN2 ----------------
    TQ = _pick_tile(S, 256)
    nq = S // TQ
    out = pl.pallas_call(
        functools.partial(attn_ffn_kernel, scale=scale, eps=eps),
        out_shape=jax.ShapeDtypeStruct((B, S, D), src.dtype),
        grid=(B, nq),
        in_specs=[
            pl.BlockSpec((1, nhead, TQ, hd), lambda b, qi: (b, 0, qi, 0)),  # q block
            pl.BlockSpec((1, nhead, S, hd), lambda b, qi: (b, 0, 0, 0)),    # k (full keys)
            pl.BlockSpec((1, nhead, S, hd), lambda b, qi: (b, 0, 0, 0)),    # v (full keys)
            pl.BlockSpec((1, 1, S), lambda b, qi: (b, 0, 0)),               # additive mask
            pl.BlockSpec((1, TQ, D), lambda b, qi: (b, qi, 0)),             # x (residual)
            pl.BlockSpec((nhead, hd, D), lambda b, qi: (0, 0, 0)),          # wout per head
            pl.BlockSpec((1, D), lambda b, qi: (0, 0)),                     # bout
            pl.BlockSpec((1, D), lambda b, qi: (0, 0)),                     # ln1 gamma
            pl.BlockSpec((1, D), lambda b, qi: (0, 0)),                     # ln1 beta
            pl.BlockSpec((D, FF), lambda b, qi: (0, 0)),                    # w1^T
            pl.BlockSpec((1, FF), lambda b, qi: (0, 0)),                    # b1
            pl.BlockSpec((FF, D), lambda b, qi: (0, 0)),                    # w2^T
            pl.BlockSpec((1, D), lambda b, qi: (0, 0)),                     # b2
            pl.BlockSpec((1, D), lambda b, qi: (0, 0)),                     # ln2 gamma
            pl.BlockSpec((1, D), lambda b, qi: (0, 0)),                     # ln2 beta
        ],
        out_specs=pl.BlockSpec((1, TQ, D), lambda b, qi: (b, qi, 0)),
        compiler_params=pltpu.CompilerParams(
            dimension_semantics=("parallel", "parallel"),
            vmem_limit_bytes=_VMEM_LIMIT),
    )(q, k, v, mask_add, src, wout_h, params['bout'],
      params['g1'], params['be1'], w1_t, params['b1'],
      w2_t, params['b2'], params['g2'], params['be2'])
    return out


def reference_layer(src, key_padding_mask, params, *, nhead, eps=1e-5):
    """Pure-JAX reference (post-norm, eval mode) mirroring the kernel's bf16/f32 precision."""
    B, S, D = src.shape
    hd = D // nhead
    scale = 1.0 / (hd ** 0.5)
    f32 = jnp.float32
    bf = lambda a: a.astype(jnp.bfloat16)

    qkv = jnp.dot(bf(src), bf(params['wqkv'].T), preferred_element_type=f32) + params['bqkv'][0]
    qkv = bf(qkv)
    q, k, v = qkv[..., :D], qkv[..., D:2 * D], qkv[..., 2 * D:]
    q = q.reshape(B, S, nhead, hd).transpose(0, 2, 1, 3)
    k = k.reshape(B, S, nhead, hd).transpose(0, 2, 1, 3)
    v = v.reshape(B, S, nhead, hd).transpose(0, 2, 1, 3)
    scores = jnp.einsum('bhqd,bhkd->bhqk', q, k, preferred_element_type=f32) * scale
    scores = scores + jnp.where(key_padding_mask, -1e30, 0.0)[:, None, None, :]
    p = jax.nn.softmax(scores, axis=-1)
    ctx = jnp.einsum('bhqk,bhkd->bhqd', bf(p), v, preferred_element_type=f32)
    attn = ctx.transpose(0, 2, 1, 3).reshape(B, S, D)
    attn = jnp.dot(bf(attn), bf(params['wout'].T), preferred_element_type=f32) + params['bout'][0]

    def ln(x, g, b):
        mu = jnp.mean(x, -1, keepdims=True)
        var = jnp.mean((x - mu) ** 2, -1, keepdims=True)
        return (x - mu) * jax.lax.rsqrt(var + eps) * g[0] + b[0]

    x = ln(src + attn, params['g1'], params['be1'])
    h1 = jnp.maximum(
        jnp.dot(bf(x), bf(params['w1'].T), preferred_element_type=f32) + params['b1'][0], 0.0)
    ffn = jnp.dot(bf(h1), bf(params['w2'].T), preferred_element_type=f32) + params['b2'][0]
    return ln(x + ffn, params['g2'], params['be2'])


if __name__ == "__main__":
    B, S, D, H, FF = 2, 8, 32, 4, 64   # batch, seq, d_model, nhead, dim_feedforward
    key = jax.random.PRNGKey(0)
    ks = jax.random.split(key, 12)

    def init(k, shape, scl=0.05):
        return jax.random.normal(k, shape, jnp.float32) * scl

    params = {
        'wqkv': init(ks[0], (3 * D, D)),
        'bqkv': init(ks[1], (1, 3 * D), 0.02),
        'wout': init(ks[2], (D, D)),
        'bout': init(ks[3], (1, D), 0.02),
        'g1':   1.0 + init(ks[4], (1, D), 0.02),
        'be1':  init(ks[5], (1, D), 0.02),
        'w1':   init(ks[6], (FF, D)),
        'b1':   init(ks[7], (1, FF), 0.02),
        'w2':   init(ks[8], (D, FF)),
        'b2':   init(ks[9], (1, D), 0.02),
        'g2':   1.0 + init(ks[10], (1, D), 0.02),
        'be2':  init(ks[11], (1, D), 0.02),
    }

    src = jax.random.normal(jax.random.PRNGKey(1), (B, S, D), jnp.float32)
    # key padding mask: True = padded token (PyTorch src_key_padding_mask convention).
    kpm = jnp.zeros((B, S), bool).at[1, -2:].set(True)

    out = flash_transformer_encoder_layer(src, kpm, params, nhead=H)
    jax.block_until_ready(out)

    ref = reference_layer(src, kpm, params, nhead=H)
    assert jnp.allclose(out, ref, atol=1e-2, rtol=1e-2), "mismatch vs pure-JAX reference"

    print("KERNEL_OK")
</pallas_src>

<mosaic_0001>
module attributes {stable_mosaic.version = 11 : i64} {
  func.func @qkv_proj_kernel(%arg0: i32, %arg1: memref<16x32xf32, #tpu.memory_space<vmem>>, %arg2: memref<32x96xbf16, #tpu.memory_space<vmem>>, %arg3: memref<1x96xf32, #tpu.memory_space<vmem>>, %arg4: memref<16x96xbf16, #tpu.memory_space<vmem>>) attributes {dimension_semantics = [#tpu.dimension_semantics<parallel>], iteration_bounds = array<i64: 1>, scalar_prefetch = 0 : i64, scratch_operands = 0 : i64, tpu.core_type = #tpu.core_type<tc>, window_params = [{transform_indices = @transform_0, window_bounds = array<i64: 16, 32>}, {pipeline_mode = #tpu.pipeline_mode<synchronous>, transform_indices = @transform_1, window_bounds = array<i64: 32, 96>}, {pipeline_mode = #tpu.pipeline_mode<synchronous>, transform_indices = @transform_2, window_bounds = array<i64: 1, 96>}, {transform_indices = @transform_3, window_bounds = array<i64: 16, 96>}]} {
    %c0 = arith.constant 0 : index
    %c0_0 = arith.constant 0 : index
    %0 = vector.load %arg1[%c0, %c0_0] : memref<16x32xf32, #tpu.memory_space<vmem>>, vector<16x32xf32>
    %1 = arith.truncf %0 : vector<16x32xf32> to vector<16x32xbf16>
    %c0_1 = arith.constant 0 : index
    %c0_2 = arith.constant 0 : index
    %2 = vector.load %arg2[%c0_1, %c0_2] : memref<32x96xbf16, #tpu.memory_space<vmem>>, vector<32x96xbf16>
    %cst = arith.constant dense<0.000000e+00> : vector<16x96xf32>
    %3 = tpu.matmul %1, %2, %cst {dimension_numbers = #tpu.dot_dimension_numbers<[1], [0], [0], [1], [0, 0, 1, 1], [], []>} : vector<16x32xbf16>, vector<32x96xbf16>, vector<16x96xf32> -> vector<16x96xf32>
    %c0_3 = arith.constant 0 : index
    %c0_4 = arith.constant 0 : index
    %4 = vector.load %arg3[%c0_3, %c0_4] : memref<1x96xf32, #tpu.memory_space<vmem>>, vector<1x96xf32>
    %5 = vector.broadcast %4 : vector<1x96xf32> to vector<16x96xf32>
    %6 = arith.addf %3, %5 : vector<16x96xf32>
    %7 = arith.truncf %6 : vector<16x96xf32> to vector<16x96xbf16>
    %c0_5 = arith.constant 0 : index
    %c0_6 = arith.constant 0 : index
    %8 = vector.load %arg4[%c0_5, %c0_6] : memref<16x96xbf16, #tpu.memory_space<vmem>>, vector<16x96xbf16>
    tpu.vector_store %arg4[%c0_5, %c0_6], %7 {strides = array<i32>} : memref<16x96xbf16, #tpu.memory_space<vmem>>, vector<16x96xbf16>,
    return
  }
  func.func @transform_0(%arg0: i32) -> (i32, i32) {
    %c0_i32 = arith.constant 0 : i32
    %c0_i32_0 = arith.constant 0 : i32
    return %arg0, %c0_i32 : i32, i32
  }
  func.func @transform_1(%arg0: i32) -> (i32, i32) {
    %c0_i32 = arith.constant 0 : i32
    %c0_i32_0 = arith.constant 0 : i32
    %c0_i32_1 = arith.constant 0 : i32
    return %c0_i32, %c0_i32_0 : i32, i32
  }
  func.func @transform_2(%arg0: i32) -> (i32, i32) {
    %c0_i32 = arith.constant 0 : i32
    %c0_i32_0 = arith.constant 0 : i32
    %c0_i32_1 = arith.constant 0 : i32
    return %c0_i32, %c0_i32_0 : i32, i32
  }
  func.func @transform_3(%arg0: i32) -> (i32, i32) {
    %c0_i32 = arith.constant 0 : i32
    %c0_i32_0 = arith.constant 0 : i32
    return %arg0, %c0_i32 : i32, i32
  }
}

</mosaic_0001>

<llo_original>
// kernel: tpu_custom_call.1
$region0: #{tpu_custom_call.1}
  #allocation0 [shape = 'u32[]', space=smem, size = 0x4, offset = 0x4, fixed_abs, tag = 'smem constant byte address 0x4 - core index']
  #allocation1 [shape = 'u32[144,128]{1,0:T(1,128)}', space=vmem, size = 0x12000, scoped, tag = 'internal scratch']
  %s0 = inlined_call_operand.hbm [shape: f32[16,32], index: 0, kind: input, shape index: {}]
  %s1 = inlined_call_operand.hbm [shape: bf16[32,96], index: 1, kind: input, shape index: {}]
  %s2 = inlined_call_operand.hbm [shape: f32[1,96], index: 2, kind: input, shape index: {}]
  %s3 = inlined_call_operand.hbm [shape: bf16[16,96], index: 3, kind: output, shape index: {}]
  %s4 = sld [smem:[#allocation0]]
  $region34: #{tpu_custom_call.1} parent=0
    _
  %s6 = ssub.s32 1, %s4
  %s7 = scalar_select 0, %s6, %s4
  $region1: #{tpu_custom_call.1} parent=0
    #allocation2 [shape = 'u8[8192]{0}', space=vmem, size = 0x2000, scoped, tag = 'input window, operand 0, single buffered']
    #allocation3 [shape = 's32[1]{0}', space=sflag, size = 0x4, scoped, tag = 'scoped memory for tpu_custom_call.1']
    #allocation4 [shape = 's32[1]{0}', space=sflag, size = 0x4, scoped, tag = 'scoped memory for tpu_custom_call.1']
    #allocation5 [shape = 'u8[8192]{0}', space=vmem, size = 0x2000, scoped, tag = 'input window, operand 1, single buffered']
    #allocation6 [shape = 's32[1]{0}', space=sflag, size = 0x4, scoped, tag = 'scoped memory for tpu_custom_call.1']
    #allocation7 [shape = 'u8[512]{0}', space=vmem, size = 0x400, scoped, tag = 'input window, operand 2, single buffered']
    #allocation8 [shape = 'u8[4096]{0}', space=vmem, size = 0x1000, scoped, tag = 'output window, operand 0, single buffered']
    %8 = vsyncpa [#allocation3], 0
    %9 = vsyncpa [#allocation6], 0
    %10 = vsyncpa [#allocation4], 0
    // Predicated region
    $region2: #{tpu_custom_call.1} parent=1 // pred_check
      _
    $region3: #{tpu_custom_call.1} parent=1 // pred_check_branch
      %12 = sbr.rel (0) target = $region5
    $region4: #{tpu_custom_call.1} parent=1 // pred_region
      %s14 = ssub.s32 256, 256
      %15 = vsyncadd [#allocation3], %s14
      %s16 = sshll.u32 [#allocation2], 4
      %s17 = int_to_ptr.vmem [resolvable:$true] %s16
      %22 = dma.hbm_to_vmem [thread:$0]  %s0, 256, %s17, [#allocation3], 128, 128, 8
    $region5: #{tpu_custom_call.1} parent=1 // pred_fallthru
      _
    // Predicated region
    $region6: #{tpu_custom_call.1} parent=1 // pred_check
      _
    $region7: #{tpu_custom_call.1} parent=1 // pred_check_branch
      %24 = sbr.rel (0) target = $region9
    $region8: #{tpu_custom_call.1} parent=1 // pred_region
      %s26 = ssub.s32 256, 256
      %27 = vsyncadd [#allocation6], %s26
      %s28 = sshll.u32 [#allocation5], 4
      %s29 = int_to_ptr.vmem [resolvable:$true] %s28
      %34 = dma.hbm_to_vmem [thread:$0]  %s1, 256, %s29, [#allocation6], 64, 64, 4
    $region9: #{tpu_custom_call.1} parent=1 // pred_fallthru
      _
    // Predicated region
    $region10: #{tpu_custom_call.1} parent=1 // pred_check
      _
    $region11: #{tpu_custom_call.1} parent=1 // pred_check_branch
      %36 = sbr.rel (0) target = $region13
    $region12: #{tpu_custom_call.1} parent=1 // pred_region
      %s38 = ssub.s32 16, 16
      %39 = vsyncadd [#allocation6], %s38
      %s41 = sshll.u32 [#allocation7], 4
      %s42 = int_to_ptr.vmem [resolvable:$true] %s41
      %44 = dma.hbm_to_vmem [thread:$0]  %s2, 16, %s42, [#allocation6]
    $region13: #{tpu_custom_call.1} parent=1 // pred_fallthru
      _
    // Predicated region
    $region14: #{tpu_custom_call.1} parent=1 // pred_check
      _
    $region15: #{tpu_custom_call.1} parent=1 // pred_check_branch
      %46 = sbr.rel (0) target = $region17
    $region16: #{tpu_custom_call.1} parent=1 // pred_region
      %47 = dma.done [#allocation3], 256
    $region17: #{tpu_custom_call.1} parent=1 // pred_fallthru
      _
    // Predicated region
    $region18: #{tpu_custom_call.1} parent=1 // pred_check
      _
    $region19: #{tpu_custom_call.1} parent=1 // pred_check_branch
      %49 = sbr.rel (0) target = $region21
    $region20: #{tpu_custom_call.1} parent=1 // pred_region
      %50 = dma.done [#allocation6], 256
    $region21: #{tpu_custom_call.1} parent=1 // pred_fallthru
      _
    // Predicated region
    $region22: #{tpu_custom_call.1} parent=1 // pred_check
      _
    $region23: #{tpu_custom_call.1} parent=1 // pred_check_branch
      %52 = sbr.rel (0) target = $region25
    $region24: #{tpu_custom_call.1} parent=1 // pred_region
      %53 = dma.done [#allocation6], 16
    $region25: #{tpu_custom_call.1} parent=1 // pred_fallthru
      _
    %v55 = vld [vmem:[#allocation2] sm:$0xff]
    %v56 = vld [vmem:[#allocation2 + $0x8] sm:$0xff]
    %v57 = vpack.c.bf16 %v56, %v55
    %v58 = vld [vmem:[#allocation5] sm:$0xf]
    %v59 = vld [vmem:[#allocation5 + $0x4] sm:$0xf]
    %v60 = vld [vmem:[#allocation5 + $0x8] sm:$0xf]
    %v61 = vld [vmem:[#allocation5 + $0xc] sm:$0xf]
    %v62 = vld [vmem:[#allocation7] sm:$0x1]
    %v64 = vlaneseq
    %v65 = vshrl.u32 %v64, 7
    %v66 = vsub.s32 0, %v65
    %v67 = vrot.slane %v62, %v66
    %v73 = vunpack.c.l.b16 %v58
    %v74 = vunpack.c.l.b16 %v59
    %v75 = vunpack.c.l.b16 %v60
    %v76 = vunpack.c.l.b16 %v61
    %v77 = vpack.c.b16 %v74, %v73
    %v78 = vpack.c.b16 %v76, %v75
    %vm81 = vcmask 261120
    %v83 = vsel %vm81, %v57, 0
    %85 = vmatprep.subr.bf16.mxu0 0
    %86 = vmatpush1.bf16.msra.mxu0 %v77
    %87 = vmatprep.subr.bf16.mxu0 0
    %88 = vmatpush1.bf16.msra.mxu0 %v78
    %89 = vmatprep.subr.bf16.mxu0 0
    %90 = vmatpush1.bf16.msra.mxu0 0
    %91 = vmatprep.subr.bf16.mxu0 0
    %92 = vmatpush1.bf16.msra.mxu0 0
    %93 = vmatprep.subr.bf16.mxu0 0
    %94 = vmatpush1.bf16.msra.mxu0 0
    %95 = vmatprep.subr.bf16.mxu0 0
    %96 = vmatpush1.bf16.msra.mxu0 0
    %97 = vmatprep.subr.bf16.mxu0 0
    %98 = vmatpush1.bf16.msra.mxu0 0
    %99 = vmatprep.subr.bf16.mxu0 0
    %100 = vmatpush1.bf16.msra.mxu0 0
    %101 = vmatprep.subr.bf16.mxu0 0
    %102 = vmatpush1.bf16.msra.mxu0 0
    %103 = vmatprep.subr.bf16.mxu0 0
    %104 = vmatpush1.bf16.msra.mxu0 0
    %105 = vmatprep.subr.bf16.mxu0 0
    %106 = vmatpush1.bf16.msra.mxu0 0
    %107 = vmatprep.subr.bf16.mxu0 0
    %108 = vmatpush1.bf16.msra.mxu0 0
    %109 = vmatprep.subr.bf16.mxu0 0
    %110 = vmatpush1.bf16.msra.mxu0 0
    %111 = vmatprep.subr.bf16.mxu0 0
    %112 = vmatpush1.bf16.msra.mxu0 0
    %113 = vmatprep.subr.bf16.mxu0 0
    %114 = vmatpush1.bf16.msra.mxu0 0
    %115 = vmatprep.subr.bf16.mxu0 0
    %116 = vmatpush1.bf16.msra.mxu0 0
    %117 = vmatprep.mubr.bf16.mxu0 0
    %118 = vmatmul.mubr.bf16.gmra.mrb[0].mxu0 %v83
    %v119 = vpop.f32.mrb[0].mxu0
    %v120 = vadd.f32 %v67, %v119
    %v121 = vpop.f32.mrb[0].mxu0
    %v122 = vpop.f32.mrb[0].mxu0
    %v123 = vadd.f32 %v67, %v122
    %v124 = vpop.f32.mrb[0].mxu0
    %125 = vdwg.mxu0
    %v126 = vpack.c.bf16 %v123, %v120
    %v128 = vunpack.c.l.b16 %v126
    %v129 = vunpack.c.h.b16 %v126
    %v130 = vpack.c.b16 %v128, %v128
    %v131 = vpack.c.b16 %v129, %v129
    %vm134 = vcmask 781312
    %135 = vst.msk [vmem:[#allocation8] sm:$0xf] %vm134, %v130
    %136 = vst.msk [vmem:[#allocation8 + $0x4] sm:$0xf] %vm134, %v131
    // Predicated region
    $region26: #{tpu_custom_call.1} parent=1 // pred_check
      _
    $region27: #{tpu_custom_call.1} parent=1 // pred_check_branch
      %138 = sbr.rel (0) target = $region29
    $region28: #{tpu_custom_call.1} parent=1 // pred_region
      %s140 = ssub.s32 128, 128
      %141 = vsyncadd [#allocation4], %s140
      %s142 = sshll.u32 [#allocation8], 4
      %s143 = int_to_ptr.vmem [resolvable:$true] %s142
      %148 = dma.vmem_to_hbm [thread:$0]  %s143, 128, %s3, [#allocation4], 64, 64, 4
    $region29: #{tpu_custom_call.1} parent=1 // pred_fallthru
      _
    // Predicated region
    $region30: #{tpu_custom_call.1} parent=1 // pred_check
      _
    $region31: #{tpu_custom_call.1} parent=1 // pred_check_branch
      %150 = sbr.rel (0) target = $region33
    $region32: #{tpu_custom_call.1} parent=1 // pred_region
      %151 = dma.done [#allocation4], 128
    $region33: #{tpu_custom_call.1} parent=1 // pred_fallthru
      _
    %152 = vsyncpa [#allocation3], 1
    %153 = vsyncpa [#allocation6], 1
    %154 = vsyncpa [#allocation4], 1

</llo_original>
